<compile_context>
chip_gen: v5e
topology: v5e:2x2
jax: 0.10.0
libtpu: 0.0.40
codegen_flags: <defaults>
</compile_context>

<pallas_src>
import functools

import jax
import jax.numpy as jnp
from jax.experimental import pallas as pl
from jax.experimental.pallas import tpu as pltpu

EPS = 1e-5  # BatchNorm2d eps


def _make_conv_stats_kernel(kh, Ho, WoC):
    """Pass 1: implicit-GEMM conv for one image; emit (2, Wo*Cout) partial sums
    (sum and sum-of-squares reduced over the Ho rows)."""

    def kernel(x_ref, wt_ref, stats_ref):
        xh = x_ref[...]                      # (Hp, Wp*Cin) bf16
        wt = wt_ref[...]                     # (kh, Wp*Cin, Wo*Cout) bf16
        acc = jnp.zeros((Ho, WoC), jnp.float32)
        for di in range(kh):                 # kh shifted MXU matmuls, f32 accumulate
            acc += jnp.dot(xh[di:di + Ho, :], wt[di],
                           preferred_element_type=jnp.float32)
        stats_ref[...] = jnp.concatenate(
            [jnp.sum(acc, axis=0, keepdims=True),
             jnp.sum(acc * acc, axis=0, keepdims=True)], axis=0)

    return kernel


def _make_conv_bn_relu_kernel(kh, Ho, WoC):
    """Pass 2: recompute the conv, then fused BN affine (single FMA) + ReLU."""

    def kernel(x_ref, wt_ref, ss_ref, o_ref):
        xh = x_ref[...]
        wt = wt_ref[...]
        acc = jnp.zeros((Ho, WoC), jnp.float32)
        for di in range(kh):
            acc += jnp.dot(xh[di:di + Ho, :], wt[di],
                           preferred_element_type=jnp.float32)
        ss = ss_ref[...]                     # (2, Wo*Cout): scale row, shift row
        o_ref[...] = jnp.maximum(acc * ss[0:1, :] + ss[1:2, :], 0.0)

    return kernel


@functools.partial(jax.jit,
                   static_argnames=("stride", "padding", "dilation", "groups"))
def basic_conv(x, weight, bias, gamma, beta, *, stride=1, padding=0,
               dilation=1, groups=1):
    """x: (N, Cin, H, W) f32. weight: (Cout, Cin, kh, kw). Returns (N, Cout, Ho, Wo) f32."""
    del bias  # Exactly cancelled by train-mode BatchNorm's mean subtraction (dead work).
    assert stride == 1 and dilation == 1 and groups == 1, (
        "TODO(synk): only stride=1, dilation=1, groups=1 implemented")

    N, Cin, H, W = x.shape
    Cout, _, kh, kw = weight.shape
    Hp, Wp = H + 2 * padding, W + 2 * padding
    Ho, Wo = Hp - kh + 1, Wp - kw + 1
    WpC, WoC = Wp * Cin, Wo * Cout
    M = N * Ho * Wo

    # --- glue: NCHW -> NHWC in bf16, zero-pad spatially, fold (Wp, Cin) into lanes.
    xh = jnp.transpose(x, (0, 2, 3, 1)).astype(jnp.bfloat16)
    xh = jnp.pad(xh, ((0, 0), (padding, padding), (padding, padding), (0, 0)))
    xh = xh.reshape(N, Hp, WpC)

    # --- width-expanded (block-Toeplitz) weights:
    #     wt[di, p*Cin+ci, w*Cout+co] = weight[co, ci, di, dj] where p == w + dj.
    #     Weight-sized * Wo duplication only (tiny; stays VMEM-resident across the grid).
    wk = jnp.transpose(weight, (2, 3, 1, 0)).astype(jnp.float32)   # (kh, kw, Cin, Cout)
    p_i = jax.lax.broadcasted_iota(jnp.int32, (Wp, Wo, kw), 0)
    w_i = jax.lax.broadcasted_iota(jnp.int32, (Wp, Wo, kw), 1)
    d_i = jax.lax.broadcasted_iota(jnp.int32, (Wp, Wo, kw), 2)
    sel = (p_i == w_i * stride + d_i).astype(jnp.float32)
    wt = jnp.einsum("pwd,adco->apcwo", sel, wk)                    # (kh,Wp,Cin,Wo,Cout)
    wt = wt.reshape(kh, WpC, WoC).astype(jnp.bfloat16)

    # --- pass 1: per-image partial BN stats; disjoint blocks -> "parallel" (megacore-safe).
    stats = pl.pallas_call(
        _make_conv_stats_kernel(kh, Ho, WoC),
        out_shape=jax.ShapeDtypeStruct((N, 2, WoC), jnp.float32),
        grid_spec=pltpu.PrefetchScalarGridSpec(
            num_scalar_prefetch=0,
            grid=(N,),
            in_specs=[pl.BlockSpec((None, Hp, WpC), lambda n: (n, 0, 0)),
                      pl.BlockSpec((kh, WpC, WoC), lambda n: (0, 0, 0))],
            out_specs=pl.BlockSpec((None, 2, WoC), lambda n: (n, 0, 0)),
        ),
        compiler_params=pltpu.CompilerParams(dimension_semantics=("parallel",)),
    )(xh, wt)

    # --- fold BN (train-mode batch stats) into one (scale, shift) pair per channel.
    # NOTE: E[y^2]-E[y]^2 in f32; adequate at these scales (two-level: per-image then global).
    s = jnp.sum(stats, axis=0).reshape(2, Wo, Cout).sum(axis=1)    # (2, Cout)
    mean = s[0] / M
    var = jnp.maximum(s[1] / M - mean * mean, 0.0)                 # biased var, as PyTorch BN
    scale = gamma.astype(jnp.float32) * jax.lax.rsqrt(var + EPS)
    shift = beta.astype(jnp.float32) - mean * scale
    ss = jnp.stack([jnp.tile(scale, Wo), jnp.tile(shift, Wo)], axis=0)   # (2, Wo*Cout)

    # --- pass 2: recompute conv + fused BN FMA + ReLU; lane-dense unpadded stores.
    out = pl.pallas_call(
        _make_conv_bn_relu_kernel(kh, Ho, WoC),
        out_shape=jax.ShapeDtypeStruct((N, Ho, WoC), jnp.float32),
        grid_spec=pltpu.PrefetchScalarGridSpec(
            num_scalar_prefetch=0,
            grid=(N,),
            in_specs=[pl.BlockSpec((None, Hp, WpC), lambda n: (n, 0, 0)),
                      pl.BlockSpec((kh, WpC, WoC), lambda n: (0, 0, 0)),
                      pl.BlockSpec((2, WoC), lambda n: (0, 0))],
            out_specs=pl.BlockSpec((None, Ho, WoC), lambda n: (n, 0, 0)),
        ),
        compiler_params=pltpu.CompilerParams(dimension_semantics=("parallel",)),
    )(xh, wt, ss)

    # --- glue: back to NCHW (module contract). Returning NHWC would save this pass.
    return out.reshape(N, Ho, Wo, Cout).transpose(0, 3, 1, 2)


if __name__ == "__main__":
    # BasicConv(in_planes=4, out_planes=8, kernel_size=3, stride=1, padding=1,
    #           relu=True, bn=True, bias=True)
    N, Cin, H, W = 2, 4, 16, 16
    Cout, k = 8, 3
    stride, padding = 1, 1

    key = jax.random.PRNGKey(0)
    kx, kw_, kb = jax.random.split(key, 3)
    x = jax.random.normal(kx, (N, Cin, H, W), dtype=jnp.float32)
    weight = jax.random.normal(kw_, (Cout, Cin, k, k), dtype=jnp.float32) * 0.1
    bias = jax.random.normal(kb, (Cout,), dtype=jnp.float32) * 0.1
    gamma = jnp.ones((Cout,), dtype=jnp.float32)   # BatchNorm2d weight init
    beta = jnp.zeros((Cout,), dtype=jnp.float32)   # BatchNorm2d bias init

    out = basic_conv(x, weight, bias, gamma, beta, stride=stride, padding=padding)
    jax.block_until_ready(out)
    assert out.shape == (N, Cout, H, W), out.shape

    # Plain-JAX f32 reference: conv + train-mode BN + ReLU (bias included; BN cancels it).
    ref = jax.lax.conv_general_dilated(
        x, weight, window_strides=(stride, stride),
        padding=[(padding, padding), (padding, padding)],
        dimension_numbers=("NCHW", "OIHW", "NCHW"))
    ref = ref + bias.reshape(1, -1, 1, 1)
    mu = ref.mean(axis=(0, 2, 3), keepdims=True)
    vr = ref.var(axis=(0, 2, 3), keepdims=True)  # biased, as PyTorch BN normalization
    ref = (ref - mu) * jax.lax.rsqrt(vr + EPS)
    ref = ref * gamma.reshape(1, -1, 1, 1) + beta.reshape(1, -1, 1, 1)
    ref = jnp.maximum(ref, 0.0)

    max_err = float(jnp.max(jnp.abs(out - ref)))
    assert max_err < 5e-2, f"max abs err vs f32 reference: {max_err}"
    print("KERNEL_OK")
</pallas_src>

<mosaic_0001>
module attributes {stable_mosaic.version = 11 : i64} {
  func.func @kernel(%arg0: i32, %arg1: memref<1x18x72xbf16, #tpu.memory_space<vmem>>, %arg2: memref<3x72x128xbf16, #tpu.memory_space<vmem>>, %arg3: memref<1x2x128xf32, #tpu.memory_space<vmem>>) attributes {dimension_semantics = [#tpu.dimension_semantics<parallel>], iteration_bounds = array<i64: 2>, scalar_prefetch = 0 : i64, scratch_operands = 0 : i64, tpu.core_type = #tpu.core_type<tc>, window_params = [{transform_indices = @transform_0, window_bounds = array<i64: 1, 18, 72>}, {pipeline_mode = #tpu.pipeline_mode<synchronous>, transform_indices = @transform_1, window_bounds = array<i64: 3, 72, 128>}, {transform_indices = @transform_2, window_bounds = array<i64: 1, 2, 128>}]} {
    %c0 = arith.constant 0 : index
    %c0_0 = arith.constant 0 : index
    %c0_1 = arith.constant 0 : index
    %0 = vector.load %arg1[%c0, %c0_0, %c0_1] : memref<1x18x72xbf16, #tpu.memory_space<vmem>>, vector<1x18x72xbf16>
    %1 = vector.shape_cast %0 : vector<1x18x72xbf16> to vector<18x72xbf16>
    %c0_2 = arith.constant 0 : index
    %c0_3 = arith.constant 0 : index
    %c0_4 = arith.constant 0 : index
    %2 = vector.load %arg2[%c0_2, %c0_3, %c0_4] : memref<3x72x128xbf16, #tpu.memory_space<vmem>>, vector<3x72x128xbf16>
    %cst = arith.constant 0.000000e+00 : f32
    %3 = vector.broadcast %cst : f32 to vector<16x128xf32>
    %4 = vector.extract_strided_slice %1 {offsets = [0, 0], sizes = [16, 72], strides = [1, 1]} : vector<18x72xbf16> to vector<16x72xbf16>
    %5 = vector.extract_strided_slice %2 {offsets = [0, 0, 0], sizes = [1, 72, 128], strides = [1, 1, 1]} : vector<3x72x128xbf16> to vector<1x72x128xbf16>
    %6 = vector.shape_cast %5 : vector<1x72x128xbf16> to vector<72x128xbf16>
    %cst_5 = arith.constant dense<0.000000e+00> : vector<16x128xf32>
    %7 = tpu.matmul %4, %6, %cst_5 {dimension_numbers = #tpu.dot_dimension_numbers<[1], [0], [0], [1], [0, 0, 1, 1], [], []>} : vector<16x72xbf16>, vector<72x128xbf16>, vector<16x128xf32> -> vector<16x128xf32>
    %8 = arith.addf %3, %7 : vector<16x128xf32>
    %9 = vector.extract_strided_slice %1 {offsets = [1, 0], sizes = [16, 72], strides = [1, 1]} : vector<18x72xbf16> to vector<16x72xbf16>
    %10 = vector.extract_strided_slice %2 {offsets = [1, 0, 0], sizes = [1, 72, 128], strides = [1, 1, 1]} : vector<3x72x128xbf16> to vector<1x72x128xbf16>
    %11 = vector.shape_cast %10 : vector<1x72x128xbf16> to vector<72x128xbf16>
    %cst_6 = arith.constant dense<0.000000e+00> : vector<16x128xf32>
    %12 = tpu.matmul %9, %11, %cst_6 {dimension_numbers = #tpu.dot_dimension_numbers<[1], [0], [0], [1], [0, 0, 1, 1], [], []>} : vector<16x72xbf16>, vector<72x128xbf16>, vector<16x128xf32> -> vector<16x128xf32>
    %13 = arith.addf %8, %12 : vector<16x128xf32>
    %14 = vector.extract_strided_slice %1 {offsets = [2, 0], sizes = [16, 72], strides = [1, 1]} : vector<18x72xbf16> to vector<16x72xbf16>
    %15 = vector.extract_strided_slice %2 {offsets = [2, 0, 0], sizes = [1, 72, 128], strides = [1, 1, 1]} : vector<3x72x128xbf16> to vector<1x72x128xbf16>
    %16 = vector.shape_cast %15 : vector<1x72x128xbf16> to vector<72x128xbf16>
    %cst_7 = arith.constant dense<0.000000e+00> : vector<16x128xf32>
    %17 = tpu.matmul %14, %16, %cst_7 {dimension_numbers = #tpu.dot_dimension_numbers<[1], [0], [0], [1], [0, 0, 1, 1], [], []>} : vector<16x72xbf16>, vector<72x128xbf16>, vector<16x128xf32> -> vector<16x128xf32>
    %18 = arith.addf %13, %17 : vector<16x128xf32>
    %cst_8 = arith.constant dense<0.000000e+00> : vector<128xf32>
    %19 = vector.multi_reduction <add>, %18, %cst_8 [0] : vector<16x128xf32> to vector<128xf32>
    %20 = vector.shape_cast %19 : vector<128xf32> to vector<1x128xf32>
    %21 = arith.mulf %18, %18 : vector<16x128xf32>
    %cst_9 = arith.constant dense<0.000000e+00> : vector<128xf32>
    %22 = vector.multi_reduction <add>, %21, %cst_9 [0] : vector<16x128xf32> to vector<128xf32>
    %23 = vector.shape_cast %22 : vector<128xf32> to vector<1x128xf32>
    %24 = tpu.concatenate %20, %23 in 0 : vector<1x128xf32>, vector<1x128xf32> -> vector<2x128xf32>
    %c0_10 = arith.constant 0 : index
    %c0_11 = arith.constant 0 : index
    %c0_12 = arith.constant 0 : index
    %25 = vector.load %arg3[%c0_10, %c0_11, %c0_12] : memref<1x2x128xf32, #tpu.memory_space<vmem>>, vector<1x2x128xf32>
    %26 = vector.shape_cast %25 : vector<1x2x128xf32> to vector<2x128xf32>
    %27 = vector.shape_cast %24 : vector<2x128xf32> to vector<1x2x128xf32>
    tpu.vector_store %arg3[%c0_10, %c0_11, %c0_12], %27 {strides = array<i32>} : memref<1x2x128xf32, #tpu.memory_space<vmem>>, vector<1x2x128xf32>,
    return
  }
  func.func @transform_0(%arg0: i32) -> (i32, i32, i32) {
    %c0_i32 = arith.constant 0 : i32
    %c0_i32_0 = arith.constant 0 : i32
    %c0_i32_1 = arith.constant 0 : i32
    return %arg0, %c0_i32, %c0_i32_0 : i32, i32, i32
  }
  func.func @transform_1(%arg0: i32) -> (i32, i32, i32) {
    %c0_i32 = arith.constant 0 : i32
    %c0_i32_0 = arith.constant 0 : i32
    %c0_i32_1 = arith.constant 0 : i32
    %c0_i32_2 = arith.constant 0 : i32
    return %c0_i32, %c0_i32_0, %c0_i32_1 : i32, i32, i32
  }
  func.func @transform_2(%arg0: i32) -> (i32, i32, i32) {
    %c0_i32 = arith.constant 0 : i32
    %c0_i32_0 = arith.constant 0 : i32
    %c0_i32_1 = arith.constant 0 : i32
    return %arg0, %c0_i32, %c0_i32_0 : i32, i32, i32
  }
}

module attributes {stable_mosaic.version = 11 : i64} {
  func.func @kernel(%arg0: i32, %arg1: memref<1x18x72xbf16, #tpu.memory_space<vmem>>, %arg2: memref<3x72x128xbf16, #tpu.memory_space<vmem>>, %arg3: memref<2x128xf32, #tpu.memory_space<vmem>>, %arg4: memref<1x16x128xf32, #tpu.memory_space<vmem>>) attributes {dimension_semantics = [#tpu.dimension_semantics<parallel>], iteration_bounds = array<i64: 2>, scalar_prefetch = 0 : i64, scratch_operands = 0 : i64, tpu.core_type = #tpu.core_type<tc>, window_params = [{transform_indices = @transform_0, window_bounds = array<i64: 1, 18, 72>}, {pipeline_mode = #tpu.pipeline_mode<synchronous>, transform_indices = @transform_1, window_bounds = array<i64: 3, 72, 128>}, {pipeline_mode = #tpu.pipeline_mode<synchronous>, transform_indices = @transform_2, window_bounds = array<i64: 2, 128>}, {transform_indices = @transform_3, window_bounds = array<i64: 1, 16, 128>}]} {
    %c0 = arith.constant 0 : index
    %c0_0 = arith.constant 0 : index
    %c0_1 = arith.constant 0 : index
    %0 = vector.load %arg1[%c0, %c0_0, %c0_1] : memref<1x18x72xbf16, #tpu.memory_space<vmem>>, vector<1x18x72xbf16>
    %1 = vector.shape_cast %0 : vector<1x18x72xbf16> to vector<18x72xbf16>
    %c0_2 = arith.constant 0 : index
    %c0_3 = arith.constant 0 : index
    %c0_4 = arith.constant 0 : index
    %2 = vector.load %arg2[%c0_2, %c0_3, %c0_4] : memref<3x72x128xbf16, #tpu.memory_space<vmem>>, vector<3x72x128xbf16>
    %cst = arith.constant 0.000000e+00 : f32
    %3 = vector.broadcast %cst : f32 to vector<16x128xf32>
    %4 = vector.extract_strided_slice %1 {offsets = [0, 0], sizes = [16, 72], strides = [1, 1]} : vector<18x72xbf16> to vector<16x72xbf16>
    %5 = vector.extract_strided_slice %2 {offsets = [0, 0, 0], sizes = [1, 72, 128], strides = [1, 1, 1]} : vector<3x72x128xbf16> to vector<1x72x128xbf16>
    %6 = vector.shape_cast %5 : vector<1x72x128xbf16> to vector<72x128xbf16>
    %cst_5 = arith.constant dense<0.000000e+00> : vector<16x128xf32>
    %7 = tpu.matmul %4, %6, %cst_5 {dimension_numbers = #tpu.dot_dimension_numbers<[1], [0], [0], [1], [0, 0, 1, 1], [], []>} : vector<16x72xbf16>, vector<72x128xbf16>, vector<16x128xf32> -> vector<16x128xf32>
    %8 = arith.addf %3, %7 : vector<16x128xf32>
    %9 = vector.extract_strided_slice %1 {offsets = [1, 0], sizes = [16, 72], strides = [1, 1]} : vector<18x72xbf16> to vector<16x72xbf16>
    %10 = vector.extract_strided_slice %2 {offsets = [1, 0, 0], sizes = [1, 72, 128], strides = [1, 1, 1]} : vector<3x72x128xbf16> to vector<1x72x128xbf16>
    %11 = vector.shape_cast %10 : vector<1x72x128xbf16> to vector<72x128xbf16>
    %cst_6 = arith.constant dense<0.000000e+00> : vector<16x128xf32>
    %12 = tpu.matmul %9, %11, %cst_6 {dimension_numbers = #tpu.dot_dimension_numbers<[1], [0], [0], [1], [0, 0, 1, 1], [], []>} : vector<16x72xbf16>, vector<72x128xbf16>, vector<16x128xf32> -> vector<16x128xf32>
    %13 = arith.addf %8, %12 : vector<16x128xf32>
    %14 = vector.extract_strided_slice %1 {offsets = [2, 0], sizes = [16, 72], strides = [1, 1]} : vector<18x72xbf16> to vector<16x72xbf16>
    %15 = vector.extract_strided_slice %2 {offsets = [2, 0, 0], sizes = [1, 72, 128], strides = [1, 1, 1]} : vector<3x72x128xbf16> to vector<1x72x128xbf16>
    %16 = vector.shape_cast %15 : vector<1x72x128xbf16> to vector<72x128xbf16>
    %cst_7 = arith.constant dense<0.000000e+00> : vector<16x128xf32>
    %17 = tpu.matmul %14, %16, %cst_7 {dimension_numbers = #tpu.dot_dimension_numbers<[1], [0], [0], [1], [0, 0, 1, 1], [], []>} : vector<16x72xbf16>, vector<72x128xbf16>, vector<16x128xf32> -> vector<16x128xf32>
    %18 = arith.addf %13, %17 : vector<16x128xf32>
    %c0_8 = arith.constant 0 : index
    %c0_9 = arith.constant 0 : index
    %19 = vector.load %arg3[%c0_8, %c0_9] : memref<2x128xf32, #tpu.memory_space<vmem>>, vector<2x128xf32>
    %20 = vector.extract_strided_slice %19 {offsets = [0, 0], sizes = [1, 128], strides = [1, 1]} : vector<2x128xf32> to vector<1x128xf32>
    %21 = vector.broadcast %20 : vector<1x128xf32> to vector<16x128xf32>
    %22 = arith.mulf %18, %21 : vector<16x128xf32>
    %23 = vector.extract_strided_slice %19 {offsets = [1, 0], sizes = [1, 128], strides = [1, 1]} : vector<2x128xf32> to vector<1x128xf32>
    %24 = vector.broadcast %23 : vector<1x128xf32> to vector<16x128xf32>
    %25 = arith.addf %22, %24 : vector<16x128xf32>
    %cst_10 = arith.constant 0.000000e+00 : f32
    %26 = vector.broadcast %cst_10 : f32 to vector<16x128xf32>
    %27 = arith.maximumf %25, %26 : vector<16x128xf32>
    %c0_11 = arith.constant 0 : index
    %c0_12 = arith.constant 0 : index
    %c0_13 = arith.constant 0 : index
    %28 = vector.load %arg4[%c0_11, %c0_12, %c0_13] : memref<1x16x128xf32, #tpu.memory_space<vmem>>, vector<1x16x128xf32>
    %29 = vector.shape_cast %28 : vector<1x16x128xf32> to vector<16x128xf32>
    %30 = vector.shape_cast %27 : vector<16x128xf32> to vector<1x16x128xf32>
    tpu.vector_store %arg4[%c0_11, %c0_12, %c0_13], %30 {strides = array<i32>} : memref<1x16x128xf32, #tpu.memory_space<vmem>>, vector<1x16x128xf32>,
    return
  }
  func.func @transform_0(%arg0: i32) -> (i32, i32, i32) {
    %c0_i32 = arith.constant 0 : i32
    %c0_i32_0 = arith.constant 0 : i32
    %c0_i32_1 = arith.constant 0 : i32
    return %arg0, %c0_i32, %c0_i32_0 : i32, i32, i32
  }
  func.func @transform_1(%arg0: i32) -> (i32, i32, i32) {
    %c0_i32 = arith.constant 0 : i32
    %c0_i32_0 = arith.constant 0 : i32
    %c0_i32_1 = arith.constant 0 : i32
    %c0_i32_2 = arith.constant 0 : i32
    return %c0_i32, %c0_i32_0, %c0_i32_1 : i32, i32, i32
  }
  func.func @transform_2(%arg0: i32) -> (i32, i32) {
    %c0_i32 = arith.constant 0 : i32
    %c0_i32_0 = arith.constant 0 : i32
    %c0_i32_1 = arith.constant 0 : i32
    return %c0_i32, %c0_i32_0 : i32, i32
  }
  func.func @transform_3(%arg0: i32) -> (i32, i32, i32) {
    %c0_i32 = arith.constant 0 : i32
    %c0_i32_0 = arith.constant 0 : i32
    %c0_i32_1 = arith.constant 0 : i32
    return %arg0, %c0_i32, %c0_i32_0 : i32, i32, i32
  }
}

</mosaic_0001>

<llo_original>
// kernel: tile.13
$region0: #{tile.13}
  #allocation0 [shape = 's32[1]{0}', space=sflag, size = 0x4, scoped, tag = 'scoped memory for tile.13']
  %s0 = inlined_call_operand.vmem [shape: f32[8], index: 0, kind: input, shape index: {}]
  %s1 = inlined_call_operand.vmem [shape: f32[16,8], index: 1, kind: output, shape index: {}]
  // Predicated region
  $region2: #{tile.13} parent=0 // pred_check
    _
  $region3: #{tile.13} parent=0 // pred_check_branch
    %3 = sbr.rel (0) target = $region5
  $region4: #{tile.13} parent=0 // pred_region
    _
  $region5: #{tile.13} parent=0 // pred_fallthru
    _
  %v4 = vld [vmem:[%s0] ss:$0 sm:$0xff]
  %5 = vst [vmem:[%s1] sm:$0xff] %v4
  %s6 = scalar_lea.vmem %s1, 8
  %7 = vst [vmem:[%s6] sm:$0xff] %v4

// kernel: tile.18
$region0: #{tile.18}
  %s0 = inlined_call_operand.vmem [shape: f32[16,8], index: 0, kind: input, shape index: {}]
  %s1 = inlined_call_operand.vmem [shape: f32[1,128], index: 1, kind: output, shape index: {}]
  $region1: #{tile.18} parent=0
    #allocation0 [shape = 'u8[4096]{0}', space=vmem, size = 0x1000, scoped, tag = 'scoped mem for output reshape']
    %v2 = vld [vmem:[%s0] sm:$0x1]
    %vm3 = vcmask 64512
    %4 = vst.msk [vmem:[#allocation0] sm:$0x1] %vm3, %v2
    %s5 = scalar_lea.vmem %s0, 15
    %v6 = vld [vmem:[%s5] sm:$0x1]
    %7 = vrot.lane.b32.xlu0 %v6, 120
    %v8 = vpop.permute.xlu0 %7
    %vm9 = vcmask 1048512
    %10 = vst.msk [vmem:[#allocation0] sm:$0x1] %vm9, %v8
    %s11 = scalar_lea.vmem %s0, 14
    %v12 = vld [vmem:[%s11] sm:$0x1]
    %13 = vrot.lane.b32.xlu0 %v12, 112
    %v14 = vpop.permute.xlu0 %13
    %vm15 = vcmask 982912
    %16 = vst.msk [vmem:[#allocation0] sm:$0x1] %vm15, %v14
    %s17 = scalar_lea.vmem %s0, 13
    %v18 = vld [vmem:[%s17] sm:$0x1]
    %19 = vrot.lane.b32.xlu0 %v18, 104
    %v20 = vpop.permute.xlu0 %19
    %vm21 = vcmask 917312
    %22 = vst.msk [vmem:[#allocation0] sm:$0x1] %vm21, %v20
    %s23 = scalar_lea.vmem %s0, 12
    %v24 = vld [vmem:[%s23] sm:$0x1]
    %25 = vrot.lane.b32.xlu0 %v24, 96
    %v26 = vpop.permute.xlu0 %25
    %vm27 = vcmask 851712
    %28 = vst.msk [vmem:[#allocation0] sm:$0x1] %vm27, %v26
    %s29 = scalar_lea.vmem %s0, 11
    %v30 = vld [vmem:[%s29] sm:$0x1]
    %31 = vrot.lane.b32.xlu0 %v30, 88
    %v32 = vpop.permute.xlu0 %31
    %vm33 = vcmask 786112
    %34 = vst.msk [vmem:[#allocation0] sm:$0x1] %vm33, %v32
    %s35 = scalar_lea.vmem %s0, 10
    %v36 = vld [vmem:[%s35] sm:$0x1]
    %37 = vrot.lane.b32.xlu0 %v36, 80
    %v38 = vpop.permute.xlu0 %37
    %vm39 = vcmask 720512
    %40 = vst.msk [vmem:[#allocation0] sm:$0x1] %vm39, %v38
    %s41 = scalar_lea.vmem %s0, 9
    %v42 = vld [vmem:[%s41] sm:$0x1]
    %43 = vrot.lane.b32.xlu0 %v42, 72
    %v44 = vpop.permute.xlu0 %43
    %vm45 = vcmask 654912
    %46 = vst.msk [vmem:[#allocation0] sm:$0x1] %vm45, %v44
    %s47 = scalar_lea.vmem %s0, 8
    %v48 = vld [vmem:[%s47] sm:$0x1]
    %49 = vrot.lane.b32.xlu0 %v48, 64
    %v50 = vpop.permute.xlu0 %49
    %vm51 = vcmask 589312
    %52 = vst.msk [vmem:[#allocation0] sm:$0x1] %vm51, %v50
    %s53 = scalar_lea.vmem %s0, 7
    %v54 = vld [vmem:[%s53] sm:$0x1]
    %55 = vrot.lane.b32.xlu0 %v54, 56
    %v56 = vpop.permute.xlu0 %55
    %vm57 = vcmask 523712
    %58 = vst.msk [vmem:[#allocation0] sm:$0x1] %vm57, %v56
    %s59 = scalar_lea.vmem %s0, 6
    %v60 = vld [vmem:[%s59] sm:$0x1]
    %61 = vrot.lane.b32.xlu0 %v60, 48
    %v62 = vpop.permute.xlu0 %61
    %vm63 = vcmask 458112
    %64 = vst.msk [vmem:[#allocation0] sm:$0x1] %vm63, %v62
    %s65 = scalar_lea.vmem %s0, 5
    %v66 = vld [vmem:[%s65] sm:$0x1]
    %67 = vrot.lane.b32.xlu0 %v66, 40
    %v68 = vpop.permute.xlu0 %67
    %vm69 = vcmask 392512
    %70 = vst.msk [vmem:[#allocation0] sm:$0x1] %vm69, %v68
    %s71 = scalar_lea.vmem %s0, 4
    %v72 = vld [vmem:[%s71] sm:$0x1]
    %73 = vrot.lane.b32.xlu0 %v72, 32
    %v74 = vpop.permute.xlu0 %73
    %vm75 = vcmask 326912
    %76 = vst.msk [vmem:[#allocation0] sm:$0x1] %vm75, %v74
    %s77 = scalar_lea.vmem %s0, 3
    %v78 = vld [vmem:[%s77] sm:$0x1]
    %79 = vrot.lane.b32.xlu0 %v78, 24
    %v80 = vpop.permute.xlu0 %79
    %vm81 = vcmask 261312
    %82 = vst.msk [vmem:[#allocation0] sm:$0x1] %vm81, %v80
    %s83 = scalar_lea.vmem %s0, 2
    %v84 = vld [vmem:[%s83] sm:$0x1]
    %85 = vrot.lane.b32.xlu0 %v84, 16
    %v86 = vpop.permute.xlu0 %85
    %vm87 = vcmask 195712
    %88 = vst.msk [vmem:[#allocation0] sm:$0x1] %vm87, %v86
    %s89 = scalar_lea.vmem %s0, 1
    %v90 = vld [vmem:[%s89] sm:$0x1]
    %91 = vrot.lane.b32.xlu0 %v90, 8
    %v92 = vpop.permute.xlu0 %91
    %vm93 = vcmask 130112
    %94 = vst.msk [vmem:[#allocation0] sm:$0x1] %vm93, %v92
    %s96 = ssub.s32 2, 1
    %v97 = vld [vmem:[#allocation0] sm:%s96]
    %s99 = ssub.s32 2, 1
    %100 = vst [vmem:[%s1] sm:%s99] %v97

// kernel: basic_conv.3
$region0: #{basic_conv.3}
  #allocation0 [shape = 'u32[]', space=smem, size = 0x4, offset = 0x4, fixed_abs, tag = 'smem constant byte address 0x4 - core index']
  #allocation1 [shape = 'u32[72,128]{1,0:T(1,128)}', space=vmem, size = 0x9000, scoped, tag = 'internal scratch']
  %s0 = inlined_call_operand.vmem [shape: bf16[2,18,72], index: 0, kind: input, shape index: {}]
  %s1 = inlined_call_operand.vmem [shape: bf16[3,72,128], index: 1, kind: input, shape index: {}]
  %s2 = inlined_call_operand.vmem [shape: f32[2,128], index: 2, kind: input, shape index: {}]
  %s3 = inlined_call_operand.vmem [shape: f32[2,16,128], index: 3, kind: output, shape index: {}]
  %s4 = sld [smem:[#allocation0]]
  $region45: #{basic_conv.3} parent=0
    _
  %s6 = ssub.s32 1, %s4
  %s7 = scalar_select 0, %s6, %s4
  loop: start=0, step=1, limit=4
  $region2: #{basic_conv.3} parent=0 // loop_pre_header
    _
  $region3: #{basic_conv.3} parent=0 // loop_header
    %s9 = sphi 0, %s13
    %p10 = scmp.ge.s32.totalorder %s9, 4
    %s19 = sphi 0, %s21
    %s22 = sphi 0, %s19
    %s23 = sphi 0, %s22
    %s39 = sphi 0, %s23
    %s43 = sphi 0, %s43
    %s45 = sphi 0, %s43
    %s46 = sphi 0, %s45
    %s60 = sphi 0, %s46
    %s64 = sphi 0, %s64
    %s66 = sphi 0, %s64
    %s67 = sphi 0, %s66
    %s81 = sphi 0, %s67
    %s87 = sphi 0, %s89
    %s90 = sphi 0, %s87
    %s91 = sphi 0, %s90
    %s107 = sphi 0, %s91
  $region4: #{basic_conv.3} parent=0 // loop_header_branch
    %12 = sbr.rel (%p10) target = $region8
  $region5: #{basic_conv.3} parent=0 // loop_body
    %s14 = ssub.s32 %s9, 1
    %s15 = ssub.s32 %s9, 2
    %s16 = sadd.s32 %s9, 1
    %s17 = ssub.s32 %s9, %s16
    %p18 = scmp.eq.s32.totalorder %s17, 0
    %s20 = sadd.s32 %s19, 1
    %s21 = scalar_select %p18, %s19, %s20
    %p24 = pneg %p18
    %p25 = scmp.eq.s32.totalorder %s9, 1
    %p26 = por %p24, %p25
    %p27 = scmp.ne.s32.totalorder %s19, %s22
    %p28 = scmp.eq.s32.totalorder %s9, 0
    %p29 = por %p27, %p28
    %p30 = scmp.ne.s32.totalorder %s19, %s22
    %p31 = scmp.eq.s32.totalorder %s14, 1
    %p32 = por %p30, %p31
    %p33 = scmp.ne.s32.totalorder %s22, %s23
    %p34 = scmp.eq.s32.totalorder %s14, 0
    %p35 = por %p33, %p34
    %p36 = scmp.ne.s32.totalorder %s22, %s23
    %p37 = scmp.eq.s32.totalorder %s15, 1
    %p38 = por %p36, %p37
    %p40 = scmp.ne.s32.totalorder %s23, %s39
    %p41 = scmp.eq.s32.totalorder %s15, 0
    %p42 = por %p40, %p41
    %s44 = sadd.s32 %s43, 1
    %p47 = scmp.eq.s32.totalorder %s9, 1
    %p48 = scmp.ne.s32.totalorder %s43, %s45
    %p49 = scmp.eq.s32.totalorder %s9, 0
    %p50 = por %p48, %p49
    %p51 = scmp.ne.s32.totalorder %s43, %s45
    %p52 = scmp.eq.s32.totalorder %s14, 1
    %p53 = por %p51, %p52
    %p54 = scmp.ne.s32.totalorder %s45, %s46
    %p55 = scmp.eq.s32.totalorder %s14, 0
    %p56 = por %p54, %p55
    %p57 = scmp.ne.s32.totalorder %s45, %s46
    %p58 = scmp.eq.s32.totalorder %s15, 1
    %p59 = por %p57, %p58
    %p61 = scmp.ne.s32.totalorder %s46, %s60
    %p62 = scmp.eq.s32.totalorder %s15, 0
    %p63 = por %p61, %p62
    %s65 = sadd.s32 %s64, 1
    %p68 = scmp.eq.s32.totalorder %s9, 1
    %p69 = scmp.ne.s32.totalorder %s64, %s66
    %p70 = scmp.eq.s32.totalorder %s9, 0
    %p71 = por %p69, %p70
    %p72 = scmp.ne.s32.totalorder %s64, %s66
    %p73 = scmp.eq.s32.totalorder %s14, 1
    %p74 = por %p72, %p73
    %p75 = scmp.ne.s32.totalorder %s66, %s67
    %p76 = scmp.eq.s32.totalorder %s14, 0
    %p77 = por %p75, %p76
    %p78 = scmp.ne.s32.totalorder %s66, %s67
    %p79 = scmp.eq.s32.totalorder %s15, 1
    %p80 = por %p78, %p79
    %p82 = scmp.ne.s32.totalorder %s67, %s81
    %p83 = scmp.eq.s32.totalorder %s15, 0
    %p84 = por %p82, %p83
    %s85 = ssub.s32 %s9, %s16
    %p86 = scmp.eq.s32.totalorder %s85, 0
    %s88 = sadd.s32 %s87, 1
    %s89 = scalar_select %p86, %s87, %s88
    %p92 = pneg %p86
    %p93 = scmp.eq.s32.totalorder %s9, 1
    %p94 = por %p92, %p93
    %p95 = scmp.ne.s32.totalorder %s87, %s90
    %p96 = scmp.eq.s32.totalorder %s9, 0
    %p97 = por %p95, %p96
    %p98 = scmp.ne.s32.totalorder %s87, %s90
    %p99 = scmp.eq.s32.totalorder %s14, 1
    %p100 = por %p98, %p99
    %p101 = scmp.ne.s32.totalorder %s90, %s91
    %p102 = scmp.eq.s32.totalorder %s14, 0
    %p103 = por %p101, %p102
    %p104 = scmp.ne.s32.totalorder %s90, %s91
    %p105 = scmp.eq.s32.totalorder %s15, 1
    %p106 = por %p104, %p105
    %p108 = scmp.ne.s32.totalorder %s91, %s107
    %p109 = scmp.eq.s32.totalorder %s15, 0
    %p110 = por %p108, %p109
    %p111 = scmp.le.s32.totalorder 1, %s9
    %p112 = scmp.lt.s32.totalorder %s9, 3
    %p113 = pnand %p111, %p112
    %p114 = pneg %p113
    // Predicated region
    $region9: #{basic_conv.3} parent=5 // pred_check
      _
    $region10: #{basic_conv.3} parent=5 // pred_check_branch
      %116 = sbr.rel (%p113) target = $region12
    $region11: #{basic_conv.3} parent=5 // pred_region
      %s117 = ssub.s32 %s9, 1
      // Predicated region
      $region13: #{basic_conv.3} parent=11 // pred_check
        %p118 = pneg %p56
      $region14: #{basic_conv.3} parent=11 // pred_check_branch
        %120 = sbr.rel (%p118) target = $region16
      $region15: #{basic_conv.3} parent=11 // pred_region
        _
      $region16: #{basic_conv.3} parent=11 // pred_fallthru
        _
      // Predicated region
      $region17: #{basic_conv.3} parent=11 // pred_check
        %p121 = pneg %p77
      $region18: #{basic_conv.3} parent=11 // pred_check_branch
        %123 = sbr.rel (%p121) target = $region20
      $region19: #{basic_conv.3} parent=11 // pred_region
        _
      $region20: #{basic_conv.3} parent=11 // pred_fallthru
        _
    $region12: #{basic_conv.3} parent=5 // pred_fallthru
      _
    %p124 = scmp.lt.s32.totalorder %s9, 2
    // Predicated region
    $region21: #{basic_conv.3} parent=5 // pred_check
      %p125 = pneg %p124
    $region22: #{basic_conv.3} parent=5 // pred_check_branch
      %127 = sbr.rel (%p125) target = $region24
    $region23: #{basic_conv.3} parent=5 // pred_region
      // Predicated region
      $region25: #{basic_conv.3} parent=23 // pred_check
        %p128 = pneg %p29
      $region26: #{basic_conv.3} parent=23 // pred_check_branch
        %130 = sbr.rel (%p128) target = $region28
      $region27: #{basic_conv.3} parent=23 // pred_region
        %p131 = scmp.lt.s32.totalorder %s9, 1
        %s132 = scalar_select %p131, %s9, 1
        %s133 = smul.addr %s132, 3
        %s134 = smul.addr %s133, 4
        %s135 = scalar_lea.vmem %s0, %s134
      $region28: #{basic_conv.3} parent=23 // pred_fallthru
        _
    $region24: #{basic_conv.3} parent=5 // pred_fallthru
      _
    %p136 = scmp.le.s32.totalorder 1, %s9
    %p137 = scmp.lt.s32.totalorder %s9, 3
    %p138 = pnand %p136, %p137
    %p139 = pneg %p138
    // Predicated region
    $region29: #{basic_conv.3} parent=5 // pred_check
      _
    $region30: #{basic_conv.3} parent=5 // pred_check_branch
      %141 = sbr.rel (%p138) target = $region32
    $region31: #{basic_conv.3} parent=5 // pred_region
      %s142 = ssub.s32 %s9, 1
      %p143 = scmp.lt.s32.totalorder %s14, 1
      %s144 = scalar_select %p143, %s14, 1
      %s145 = smul.addr %s144, 3
      %s146 = smul.addr %s145, 4
      %s147 = scalar_lea.vmem %s0, %s146
      %p148 = pneg %p35
      %p149 = pneg %p32
      %p150 = pneg %p56
      %p151 = pneg %p53
      %p152 = pneg %p77
      %p153 = pneg %p74
      %p154 = pneg %p103
      %p155 = pneg %p100
      %p156 = scmp.lt.s32.totalorder %s14, 1
      %s157 = scalar_select %p156, %s14, 1
      %s158 = smul.addr %s157, 2
      %s159 = smul.addr %s158, 8
      %s160 = scalar_lea.vmem %s3, %s159
      %p161 = scmp.lt.s32.totalorder %s14, 1
      %s162 = scalar_select %p161, %s14, 1
      %s163 = smul.addr %s162, 3
      %s164 = smul.addr %s163, 4
      %s165 = scalar_lea.vmem %s0, %s164
      %p166 = scmp.lt.s32.totalorder %s14, 1
      %s167 = scalar_select %p166, %s14, 1
      %s168 = smul.addr %s167, 2
      %s169 = smul.addr %s168, 8
      %s170 = scalar_lea.vmem %s3, %s169
      %v172 = vld [vmem:[%s165] sm:$0xf]
      %v173 = vld [vmem:[%s165 + $0x4] sm:$0xf]
      %v174 = vld [vmem:[%s165 + $0x8] sm:$0x1]
      %v175 = vld [vmem:[%s1] sm:$0xf]
      %v176 = vld [vmem:[%s1 + $0x4] sm:$0xf]
      %v177 = vld [vmem:[%s1 + $0x8] sm:$0xf]
      %v178 = vld [vmem:[%s1 + $0xc] sm:$0xf]
      %v179 = vld [vmem:[%s1 + $0x10] sm:$0xf]
      %v180 = vld [vmem:[%s1 + $0x14] sm:$0xf]
      %v181 = vld [vmem:[%s1 + $0x18] sm:$0xf]
      %v182 = vld [vmem:[%s1 + $0x1c] sm:$0xf]
      %v183 = vld [vmem:[%s1 + $0x20] sm:$0xf]
      %v184 = vld [vmem:[%s1 + $0x24] sm:$0xf]
      %v185 = vld [vmem:[%s1 + $0x28] sm:$0xf]
      %v186 = vld [vmem:[%s1 + $0x2c] sm:$0xf]
      %v187 = vld [vmem:[%s1 + $0x30] sm:$0xf]
      %v188 = vld [vmem:[%s1 + $0x34] sm:$0xf]
      %v189 = vld [vmem:[%s1 + $0x38] sm:$0xf]
      %v190 = vld [vmem:[%s1 + $0x3c] sm:$0xf]
      %v191 = vld [vmem:[%s1 + $0x40] sm:$0xf]
      %v192 = vld [vmem:[%s1 + $0x44] sm:$0xf]
      %v193 = vld [vmem:[%s1 + $0x48] sm:$0xf]
      %v194 = vld [vmem:[%s1 + $0x4c] sm:$0xf]
      %v195 = vld [vmem:[%s1 + $0x50] sm:$0xf]
      %v196 = vld [vmem:[%s1 + $0x54] sm:$0xf]
      %v197 = vld [vmem:[%s1 + $0x58] sm:$0xf]
      %v198 = vld [vmem:[%s1 + $0x5c] sm:$0xf]
      %v199 = vld [vmem:[%s1 + $0x60] sm:$0xf]
      %v200 = vld [vmem:[%s1 + $0x64] sm:$0xf]
      %v201 = vld [vmem:[%s1 + $0x68] sm:$0xf]
      %v205 = vunpack.c.l.b16 %v172
      %v206 = vunpack.c.l.b16 %v173
      %v207 = vunpack.c.l.b16 %v174
      %v208 = vpack.c.b16 %v206, %v205
      %v209 = vpack.c.b16 %v207, %v207
      %vm210 = vsmask.f32 7424
      %v212 = vshrl.u32 %v208, 16
      %v214 = vshll.u32 %v208, 16
      %v216 = vrot.slane %v214, 1
      %v217 = vor.u32 %v212, %v216
      %v219 = vshll.u32 %v209, 16
      %v221 = vrot.slane %v219, 1
      %v222 = vsel %vm210, %v217, %v221
      %v232 = vunpack.c.l.b16 %v184
      %v233 = vunpack.c.l.b16 %v185
      %v234 = vunpack.c.l.b16 %v186
      %v235 = vunpack.c.l.b16 %v187
      %v236 = vunpack.c.l.b16 %v188
      %v237 = vunpack.c.l.b16 %v189
      %v238 = vunpack.c.l.b16 %v190
      %v239 = vunpack.c.l.b16 %v191
      %v240 = vunpack.c.l.b16 %v192
      %v241 = vpack.c.b16 %v233, %v232
      %v242 = vpack.c.b16 %v235, %v234
      %v243 = vpack.c.b16 %v237, %v236
      %v244 = vpack.c.b16 %v239, %v238
      %v245 = vpack.c.b16 %v240, %v240
      %vm250 = vcmask 588800
      %v252 = vsel %vm250, %v222, 0
      %vm254 = vcmask 1043456
      %v256 = vsel %vm254, %v245, 0
      %258 = vmatpush.bf16.msra.mxu0 0
      %259 = vmatpush.bf16.msra.mxu0 0
      %260 = vmatpush.bf16.msra.mxu0 0
      %261 = vmatpush.bf16.msra.mxu0 %v256
      %262 = vmatpush.bf16.msra.mxu0 %v244
      %263 = vmatpush.bf16.msra.mxu0 %v243
      %264 = vmatpush.bf16.msra.mxu0 %v242
      %265 = vmatpush.bf16.msra.mxu0 %v241
      %266 = vmatmul.bf16.gmra.mxu0 %v252
      %v267 = vpop.f32.mrf.mxu0
      %v268 = vadd.f32 0.0, %v267
      %v269 = vpop.f32.mrf.mxu0
      %v270 = vadd.f32 0.0, %v269
      %271 = vdwg.mxu0
      %v281 = vunpack.c.l.b16 %v175
      %v282 = vunpack.c.l.b16 %v176
      %v283 = vunpack.c.l.b16 %v177
      %v284 = vunpack.c.l.b16 %v178
      %v285 = vunpack.c.l.b16 %v179
      %v286 = vunpack.c.l.b16 %v180
      %v287 = vunpack.c.l.b16 %v181
      %v288 = vunpack.c.l.b16 %v182
      %v289 = vunpack.c.l.b16 %v183
      %v290 = vpack.c.b16 %v282, %v281
      %v291 = vpack.c.b16 %v284, %v283
      %v292 = vpack.c.b16 %v286, %v285
      %v293 = vpack.c.b16 %v288, %v287
      %v294 = vpack.c.b16 %v289, %v289
      %v299 = vsel %vm250, %v208, 0
      %v302 = vsel %vm254, %v294, 0
      %304 = vmatpush.bf16.msra.mxu0 0
      %305 = vmatpush.bf16.msra.mxu0 0
      %306 = vmatpush.bf16.msra.mxu0 0
      %307 = vmatpush.bf16.msra.mxu0 %v302
      %308 = vmatpush.bf16.msra.mxu0 %v293
      %309 = vmatpush.bf16.msra.mxu0 %v292
      %310 = vmatpush.bf16.msra.mxu0 %v291
      %311 = vmatpush.bf16.msra.mxu0 %v290
      %312 = vmatmul.bf16.gmra.mxu0 %v299
      %v313 = vpop.f32.mrf.mxu0
      %v314 = vadd.f32 %v268, %v313
      %v315 = vpop.f32.mrf.mxu0
      %v316 = vadd.f32 %v270, %v315
      %317 = vdwg.mxu0
      %vm318 = vcmask 1046528
      %v319 = vrot.slane %v208, 1
      %v320 = vrot.slane %v209, 1
      %v321 = vsel %vm318, %v319, %v320
      %v331 = vunpack.c.l.b16 %v193
      %v332 = vunpack.c.l.b16 %v194
      %v333 = vunpack.c.l.b16 %v195
      %v334 = vunpack.c.l.b16 %v196
      %v335 = vunpack.c.l.b16 %v197
      %v336 = vunpack.c.l.b16 %v198
      %v337 = vunpack.c.l.b16 %v199
      %v338 = vunpack.c.l.b16 %v200
      %v339 = vunpack.c.l.b16 %v201
      %v340 = vpack.c.b16 %v332, %v331
      %v341 = vpack.c.b16 %v334, %v333
      %v342 = vpack.c.b16 %v336, %v335
      %v343 = vpack.c.b16 %v338, %v337
      %v344 = vpack.c.b16 %v339, %v339
      %v350 = vsel %vm250, %v321, 0
      %v353 = vsel %vm254, %v344, 0
      %355 = vmatpush.bf16.msra.mxu0 0
      %356 = vmatpush.bf16.msra.mxu0 0
      %357 = vmatpush.bf16.msra.mxu0 0
      %358 = vmatpush.bf16.msra.mxu0 %v353
      %359 = vmatpush.bf16.msra.mxu0 %v343
      %360 = vmatpush.bf16.msra.mxu0 %v342
      %361 = vmatpush.bf16.msra.mxu0 %v341
      %362 = vmatpush.bf16.msra.mxu0 %v340
      %363 = vmatmul.bf16.gmra.mxu0 %v350
      %v364 = vpop.f32.mrf.mxu0
      %v365 = vadd.f32 0.0, %v364
      %v366 = vpop.f32.mrf.mxu0
      %v367 = vadd.f32 0.0, %v366
      %368 = vdwg.mxu0
      %v369 = vadd.f32 %v314, %v365
      %v370 = vadd.f32 %v316, %v367
      %v371 = vld [vmem:[%s2] sm:$0x3]
      %v372 = vperm.slane %v371, 0
      %v373 = vmul.f32 %v369, %v372
      %v374 = vmul.f32 %v370, %v372
      %v375 = vperm.slane %v371, 1
      %v376 = vadd.f32 %v373, %v375
      %v377 = vadd.f32 %v374, %v375
      %v378 = vmax.f32 %v376, 0.0
      %v379 = vmax.f32 %v377, 0.0
      %380 = vst [vmem:[%s170] sm:$0xff] %v378
      %381 = vst [vmem:[%s170 + $0x8] sm:$0xff] %v379
      %p382 = scmp.lt.s32.totalorder %s14, 1
      %s383 = scalar_select %p382, %s14, 1
      %s384 = smul.addr %s383, 2
      %s385 = smul.addr %s384, 8
      %s386 = scalar_lea.vmem %s3, %s385
      // Predicated region
      $region33: #{basic_conv.3} parent=31 // pred_check
        %p387 = pneg %p100
      $region34: #{basic_conv.3} parent=31 // pred_check_branch
        %389 = sbr.rel (%p387) target = $region36
      $region35: #{basic_conv.3} parent=31 // pred_region
        _
      $region36: #{basic_conv.3} parent=31 // pred_fallthru
        _
    $region32: #{basic_conv.3} parent=5 // pred_fallthru
      _
    %p390 = scmp.le.s32.totalorder 2, %s9
    // Predicated region
    $region37: #{basic_conv.3} parent=5 // pred_check
      %p391 = pneg %p390
    $region38: #{basic_conv.3} parent=5 // pred_check_branch
      %393 = sbr.rel (%p391) target = $region40
    $region39: #{basic_conv.3} parent=5 // pred_region
      %s394 = ssub.s32 %s9, 2
      // Predicated region
      $region41: #{basic_conv.3} parent=39 // pred_check
        %p395 = pneg %p106
      $region42: #{basic_conv.3} parent=39 // pred_check_branch
        %397 = sbr.rel (%p395) target = $region44
      $region43: #{basic_conv.3} parent=39 // pred_region
        %p398 = scmp.lt.s32.totalorder %s15, 1
        %s399 = scalar_select %p398, %s15, 1
        %s400 = smul.addr %s399, 2
        %s401 = smul.addr %s400, 8
        %s402 = scalar_lea.vmem %s3, %s401
      $region44: #{basic_conv.3} parent=39 // pred_fallthru
        _
    $region40: #{basic_conv.3} parent=5 // pred_fallthru
      _
  $region6: #{basic_conv.3} parent=0 // loop_footer
    %s13 = sadd.s32 1, %s9
  $region7: #{basic_conv.3} parent=0 // loop_footer_branch
    %8 = sbr.rel target = $region3
  $region8: #{basic_conv.3} parent=0 // loop_exit
    _

// kernel: basic_conv.2
$region0: #{basic_conv.2}
  #allocation0 [shape = 'u32[]', space=smem, size = 0x4, offset = 0x4, fixed_abs, tag = 'smem constant byte address 0x4 - core index']
  #allocation1 [shape = 'u32[72,128]{1,0:T(1,128)}', space=vmem, size = 0x9000, scoped, tag = 'internal scratch']
  %s0 = inlined_call_operand.vmem [shape: bf16[2,18,72], index: 0, kind: input, shape index: {}]
  %s1 = inlined_call_operand.vmem [shape: bf16[3,72,128], index: 1, kind: input, shape index: {}]
  %s2 = inlined_call_operand.vmem [shape: f32[2,2,128], index: 2, kind: output, shape index: {}]
  %s3 = sld [smem:[#allocation0]]
  $region41: #{basic_conv.2} parent=0
    _
  %s5 = ssub.s32 1, %s3
  %s6 = scalar_select 0, %s5, %s3
  loop: start=0, step=1, limit=4
  $region2: #{basic_conv.2} parent=0 // loop_pre_header
    _
  $region3: #{basic_conv.2} parent=0 // loop_header
    %s8 = sphi 0, %s12
    %p9 = scmp.ge.s32.totalorder %s8, 4
    %s18 = sphi 0, %s20
    %s21 = sphi 0, %s18
    %s22 = sphi 0, %s21
    %s38 = sphi 0, %s22
    %s42 = sphi 0, %s42
    %s44 = sphi 0, %s42
    %s45 = sphi 0, %s44
    %s59 = sphi 0, %s45
    %s65 = sphi 0, %s67
    %s68 = sphi 0, %s65
    %s69 = sphi 0, %s68
    %s85 = sphi 0, %s69
  $region4: #{basic_conv.2} parent=0 // loop_header_branch
    %11 = sbr.rel (%p9) target = $region8
  $region5: #{basic_conv.2} parent=0 // loop_body
    %s13 = ssub.s32 %s8, 1
    %s14 = ssub.s32 %s8, 2
    %s15 = sadd.s32 %s8, 1
    %s16 = ssub.s32 %s8, %s15
    %p17 = scmp.eq.s32.totalorder %s16, 0
    %s19 = sadd.s32 %s18, 1
    %s20 = scalar_select %p17, %s18, %s19
    %p23 = pneg %p17
    %p24 = scmp.eq.s32.totalorder %s8, 1
    %p25 = por %p23, %p24
    %p26 = scmp.ne.s32.totalorder %s18, %s21
    %p27 = scmp.eq.s32.totalorder %s8, 0
    %p28 = por %p26, %p27
    %p29 = scmp.ne.s32.totalorder %s18, %s21
    %p30 = scmp.eq.s32.totalorder %s13, 1
    %p31 = por %p29, %p30
    %p32 = scmp.ne.s32.totalorder %s21, %s22
    %p33 = scmp.eq.s32.totalorder %s13, 0
    %p34 = por %p32, %p33
    %p35 = scmp.ne.s32.totalorder %s21, %s22
    %p36 = scmp.eq.s32.totalorder %s14, 1
    %p37 = por %p35, %p36
    %p39 = scmp.ne.s32.totalorder %s22, %s38
    %p40 = scmp.eq.s32.totalorder %s14, 0
    %p41 = por %p39, %p40
    %s43 = sadd.s32 %s42, 1
    %p46 = scmp.eq.s32.totalorder %s8, 1
    %p47 = scmp.ne.s32.totalorder %s42, %s44
    %p48 = scmp.eq.s32.totalorder %s8, 0
    %p49 = por %p47, %p48
    %p50 = scmp.ne.s32.totalorder %s42, %s44
    %p51 = scmp.eq.s32.totalorder %s13, 1
    %p52 = por %p50, %p51
    %p53 = scmp.ne.s32.totalorder %s44, %s45
    %p54 = scmp.eq.s32.totalorder %s13, 0
    %p55 = por %p53, %p54
    %p56 = scmp.ne.s32.totalorder %s44, %s45
    %p57 = scmp.eq.s32.totalorder %s14, 1
    %p58 = por %p56, %p57
    %p60 = scmp.ne.s32.totalorder %s45, %s59
    %p61 = scmp.eq.s32.totalorder %s14, 0
    %p62 = por %p60, %p61
    %s63 = ssub.s32 %s8, %s15
    %p64 = scmp.eq.s32.totalorder %s63, 0
    %s66 = sadd.s32 %s65, 1
    %s67 = scalar_select %p64, %s65, %s66
    %p70 = pneg %p64
    %p71 = scmp.eq.s32.totalorder %s8, 1
    %p72 = por %p70, %p71
    %p73 = scmp.ne.s32.totalorder %s65, %s68
    %p74 = scmp.eq.s32.totalorder %s8, 0
    %p75 = por %p73, %p74
    %p76 = scmp.ne.s32.totalorder %s65, %s68
    %p77 = scmp.eq.s32.totalorder %s13, 1
    %p78 = por %p76, %p77
    %p79 = scmp.ne.s32.totalorder %s68, %s69
    %p80 = scmp.eq.s32.totalorder %s13, 0
    %p81 = por %p79, %p80
    %p82 = scmp.ne.s32.totalorder %s68, %s69
    %p83 = scmp.eq.s32.totalorder %s14, 1
    %p84 = por %p82, %p83
    %p86 = scmp.ne.s32.totalorder %s69, %s85
    %p87 = scmp.eq.s32.totalorder %s14, 0
    %p88 = por %p86, %p87
    %p89 = scmp.le.s32.totalorder 1, %s8
    %p90 = scmp.lt.s32.totalorder %s8, 3
    %p91 = pnand %p89, %p90
    %p92 = pneg %p91
    // Predicated region
    $region9: #{basic_conv.2} parent=5 // pred_check
      _
    $region10: #{basic_conv.2} parent=5 // pred_check_branch
      %94 = sbr.rel (%p91) target = $region12
    $region11: #{basic_conv.2} parent=5 // pred_region
      %s95 = ssub.s32 %s8, 1
      // Predicated region
      $region13: #{basic_conv.2} parent=11 // pred_check
        %p96 = pneg %p55
      $region14: #{basic_conv.2} parent=11 // pred_check_branch
        %98 = sbr.rel (%p96) target = $region16
      $region15: #{basic_conv.2} parent=11 // pred_region
        _
      $region16: #{basic_conv.2} parent=11 // pred_fallthru
        _
    $region12: #{basic_conv.2} parent=5 // pred_fallthru
      _
    %p99 = scmp.lt.s32.totalorder %s8, 2
    // Predicated region
    $region17: #{basic_conv.2} parent=5 // pred_check
      %p100 = pneg %p99
    $region18: #{basic_conv.2} parent=5 // pred_check_branch
      %102 = sbr.rel (%p100) target = $region20
    $region19: #{basic_conv.2} parent=5 // pred_region
      // Predicated region
      $region21: #{basic_conv.2} parent=19 // pred_check
        %p103 = pneg %p28
      $region22: #{basic_conv.2} parent=19 // pred_check_branch
        %105 = sbr.rel (%p103) target = $region24
      $region23: #{basic_conv.2} parent=19 // pred_region
        %p106 = scmp.lt.s32.totalorder %s8, 1
        %s107 = scalar_select %p106, %s8, 1
        %s108 = smul.addr %s107, 3
        %s109 = smul.addr %s108, 4
        %s110 = scalar_lea.vmem %s0, %s109
      $region24: #{basic_conv.2} parent=19 // pred_fallthru
        _
    $region20: #{basic_conv.2} parent=5 // pred_fallthru
      _
    %p111 = scmp.le.s32.totalorder 1, %s8
    %p112 = scmp.lt.s32.totalorder %s8, 3
    %p113 = pnand %p111, %p112
    %p114 = pneg %p113
    // Predicated region
    $region25: #{basic_conv.2} parent=5 // pred_check
      _
    $region26: #{basic_conv.2} parent=5 // pred_check_branch
      %116 = sbr.rel (%p113) target = $region28
    $region27: #{basic_conv.2} parent=5 // pred_region
      %s117 = ssub.s32 %s8, 1
      %p118 = scmp.lt.s32.totalorder %s13, 1
      %s119 = scalar_select %p118, %s13, 1
      %s120 = smul.addr %s119, 3
      %s121 = smul.addr %s120, 4
      %s122 = scalar_lea.vmem %s0, %s121
      %p123 = pneg %p34
      %p124 = pneg %p31
      %p125 = pneg %p55
      %p126 = pneg %p52
      %p127 = pneg %p81
      %p128 = pneg %p78
      %p129 = scmp.lt.s32.totalorder %s13, 1
      %s130 = scalar_select %p129, %s13, 1
      %s131 = smul.addr %s130, 2
      %s132 = scalar_lea.vmem %s2, %s131
      %p133 = scmp.lt.s32.totalorder %s13, 1
      %s134 = scalar_select %p133, %s13, 1
      %s135 = smul.addr %s134, 3
      %s136 = smul.addr %s135, 4
      %s137 = scalar_lea.vmem %s0, %s136
      %p138 = scmp.lt.s32.totalorder %s13, 1
      %s139 = scalar_select %p138, %s13, 1
      %s140 = smul.addr %s139, 2
      %s141 = scalar_lea.vmem %s2, %s140
      %v143 = vld [vmem:[%s137] sm:$0xf]
      %v144 = vld [vmem:[%s137 + $0x4] sm:$0xf]
      %v145 = vld [vmem:[%s137 + $0x8] sm:$0x1]
      %v146 = vld [vmem:[%s1] sm:$0xf]
      %v147 = vld [vmem:[%s1 + $0x4] sm:$0xf]
      %v148 = vld [vmem:[%s1 + $0x8] sm:$0xf]
      %v149 = vld [vmem:[%s1 + $0xc] sm:$0xf]
      %v150 = vld [vmem:[%s1 + $0x10] sm:$0xf]
      %v151 = vld [vmem:[%s1 + $0x14] sm:$0xf]
      %v152 = vld [vmem:[%s1 + $0x18] sm:$0xf]
      %v153 = vld [vmem:[%s1 + $0x1c] sm:$0xf]
      %v154 = vld [vmem:[%s1 + $0x20] sm:$0xf]
      %v155 = vld [vmem:[%s1 + $0x24] sm:$0xf]
      %v156 = vld [vmem:[%s1 + $0x28] sm:$0xf]
      %v157 = vld [vmem:[%s1 + $0x2c] sm:$0xf]
      %v158 = vld [vmem:[%s1 + $0x30] sm:$0xf]
      %v159 = vld [vmem:[%s1 + $0x34] sm:$0xf]
      %v160 = vld [vmem:[%s1 + $0x38] sm:$0xf]
      %v161 = vld [vmem:[%s1 + $0x3c] sm:$0xf]
      %v162 = vld [vmem:[%s1 + $0x40] sm:$0xf]
      %v163 = vld [vmem:[%s1 + $0x44] sm:$0xf]
      %v164 = vld [vmem:[%s1 + $0x48] sm:$0xf]
      %v165 = vld [vmem:[%s1 + $0x4c] sm:$0xf]
      %v166 = vld [vmem:[%s1 + $0x50] sm:$0xf]
      %v167 = vld [vmem:[%s1 + $0x54] sm:$0xf]
      %v168 = vld [vmem:[%s1 + $0x58] sm:$0xf]
      %v169 = vld [vmem:[%s1 + $0x5c] sm:$0xf]
      %v170 = vld [vmem:[%s1 + $0x60] sm:$0xf]
      %v171 = vld [vmem:[%s1 + $0x64] sm:$0xf]
      %v172 = vld [vmem:[%s1 + $0x68] sm:$0xf]
      %v176 = vunpack.c.l.b16 %v143
      %v177 = vunpack.c.l.b16 %v144
      %v178 = vunpack.c.l.b16 %v145
      %v179 = vpack.c.b16 %v177, %v176
      %v180 = vpack.c.b16 %v178, %v178
      %vm181 = vsmask.f32 7424
      %v183 = vshrl.u32 %v179, 16
      %v185 = vshll.u32 %v179, 16
      %v187 = vrot.slane %v185, 1
      %v188 = vor.u32 %v183, %v187
      %v190 = vshll.u32 %v180, 16
      %v192 = vrot.slane %v190, 1
      %v193 = vsel %vm181, %v188, %v192
      %v203 = vunpack.c.l.b16 %v155
      %v204 = vunpack.c.l.b16 %v156
      %v205 = vunpack.c.l.b16 %v157
      %v206 = vunpack.c.l.b16 %v158
      %v207 = vunpack.c.l.b16 %v159
      %v208 = vunpack.c.l.b16 %v160
      %v209 = vunpack.c.l.b16 %v161
      %v210 = vunpack.c.l.b16 %v162
      %v211 = vunpack.c.l.b16 %v163
      %v212 = vpack.c.b16 %v204, %v203
      %v213 = vpack.c.b16 %v206, %v205
      %v214 = vpack.c.b16 %v208, %v207
      %v215 = vpack.c.b16 %v210, %v209
      %v216 = vpack.c.b16 %v211, %v211
      %vm221 = vcmask 588800
      %v223 = vsel %vm221, %v193, 0
      %vm225 = vcmask 1043456
      %v227 = vsel %vm225, %v216, 0
      %229 = vmatpush.bf16.msra.mxu0 0
      %230 = vmatpush.bf16.msra.mxu0 0
      %231 = vmatpush.bf16.msra.mxu0 0
      %232 = vmatpush.bf16.msra.mxu0 %v227
      %233 = vmatpush.bf16.msra.mxu0 %v215
      %234 = vmatpush.bf16.msra.mxu0 %v214
      %235 = vmatpush.bf16.msra.mxu0 %v213
      %236 = vmatpush.bf16.msra.mxu0 %v212
      %237 = vmatmul.bf16.gmra.mxu0 %v223
      %v238 = vpop.f32.mrf.mxu0
      %v239 = vadd.f32 0.0, %v238
      %v240 = vpop.f32.mrf.mxu0
      %v241 = vadd.f32 0.0, %v240
      %242 = vdwg.mxu0
      %v252 = vunpack.c.l.b16 %v146
      %v253 = vunpack.c.l.b16 %v147
      %v254 = vunpack.c.l.b16 %v148
      %v255 = vunpack.c.l.b16 %v149
      %v256 = vunpack.c.l.b16 %v150
      %v257 = vunpack.c.l.b16 %v151
      %v258 = vunpack.c.l.b16 %v152
      %v259 = vunpack.c.l.b16 %v153
      %v260 = vunpack.c.l.b16 %v154
      %v261 = vpack.c.b16 %v253, %v252
      %v262 = vpack.c.b16 %v255, %v254
      %v263 = vpack.c.b16 %v257, %v256
      %v264 = vpack.c.b16 %v259, %v258
      %v265 = vpack.c.b16 %v260, %v260
      %v270 = vsel %vm221, %v179, 0
      %v273 = vsel %vm225, %v265, 0
      %275 = vmatpush.bf16.msra.mxu0 0
      %276 = vmatpush.bf16.msra.mxu0 0
      %277 = vmatpush.bf16.msra.mxu0 0
      %278 = vmatpush.bf16.msra.mxu0 %v273
      %279 = vmatpush.bf16.msra.mxu0 %v264
      %280 = vmatpush.bf16.msra.mxu0 %v263
      %281 = vmatpush.bf16.msra.mxu0 %v262
      %282 = vmatpush.bf16.msra.mxu0 %v261
      %283 = vmatmul.bf16.gmra.mxu0 %v270
      %v284 = vpop.f32.mrf.mxu0
      %v285 = vadd.f32 %v239, %v284
      %v286 = vpop.f32.mrf.mxu0
      %v287 = vadd.f32 %v241, %v286
      %288 = vdwg.mxu0
      %vm289 = vcmask 1046528
      %v290 = vrot.slane %v179, 1
      %v291 = vrot.slane %v180, 1
      %v292 = vsel %vm289, %v290, %v291
      %v302 = vunpack.c.l.b16 %v164
      %v303 = vunpack.c.l.b16 %v165
      %v304 = vunpack.c.l.b16 %v166
      %v305 = vunpack.c.l.b16 %v167
      %v306 = vunpack.c.l.b16 %v168
      %v307 = vunpack.c.l.b16 %v169
      %v308 = vunpack.c.l.b16 %v170
      %v309 = vunpack.c.l.b16 %v171
      %v310 = vunpack.c.l.b16 %v172
      %v311 = vpack.c.b16 %v303, %v302
      %v312 = vpack.c.b16 %v305, %v304
      %v313 = vpack.c.b16 %v307, %v306
      %v314 = vpack.c.b16 %v309, %v308
      %v315 = vpack.c.b16 %v310, %v310
      %v321 = vsel %vm221, %v292, 0
      %v324 = vsel %vm225, %v315, 0
      %326 = vmatpush.bf16.msra.mxu0 0
      %327 = vmatpush.bf16.msra.mxu0 0
      %328 = vmatpush.bf16.msra.mxu0 0
      %329 = vmatpush.bf16.msra.mxu0 %v324
      %330 = vmatpush.bf16.msra.mxu0 %v314
      %331 = vmatpush.bf16.msra.mxu0 %v313
      %332 = vmatpush.bf16.msra.mxu0 %v312
      %333 = vmatpush.bf16.msra.mxu0 %v311
      %334 = vmatmul.bf16.gmra.mxu0 %v321
      %v335 = vpop.f32.mrf.mxu0
      %v336 = vadd.f32 0.0, %v335
      %v337 = vpop.f32.mrf.mxu0
      %v338 = vadd.f32 0.0, %v337
      %339 = vdwg.mxu0
      %v340 = vadd.f32 %v285, %v336
      %v341 = vadd.f32 %v287, %v338
      %v342 = vadd.f32 %v340, %v341
      %v343 = vrot.slane %v342, 4
      %v344 = vadd.f32 %v342, %v343
      %v345 = vrot.slane %v344, 2
      %v346 = vadd.f32 %v344, %v345
      %v347 = vrot.slane %v346, 1
      %v348 = vadd.f32 %v346, %v347
      %v349 = vmul.f32 %v340, %v340
      %v350 = vmul.f32 %v341, %v341
      %v351 = vadd.f32 %v349, %v350
      %v352 = vrot.slane %v351, 4
      %v353 = vadd.f32 %v351, %v352
      %v354 = vrot.slane %v353, 2
      %v355 = vadd.f32 %v353, %v354
      %v356 = vrot.slane %v355, 1
      %v357 = vadd.f32 %v355, %v356
      %vm358 = vcmask 1040384
      %v359 = vsel %vm358, %v348, %v357
      %360 = vst [vmem:[%s141] sm:$0x3] %v359
      %p361 = scmp.lt.s32.totalorder %s13, 1
      %s362 = scalar_select %p361, %s13, 1
      %s363 = smul.addr %s362, 2
      %s364 = scalar_lea.vmem %s2, %s363
      // Predicated region
      $region29: #{basic_conv.2} parent=27 // pred_check
        %p365 = pneg %p78
      $region30: #{basic_conv.2} parent=27 // pred_check_branch
        %367 = sbr.rel (%p365) target = $region32
      $region31: #{basic_conv.2} parent=27 // pred_region
        _
      $region32: #{basic_conv.2} parent=27 // pred_fallthru
        _
    $region28: #{basic_conv.2} parent=5 // pred_fallthru
      _
    %p368 = scmp.le.s32.totalorder 2, %s8
    // Predicated region
    $region33: #{basic_conv.2} parent=5 // pred_check
      %p369 = pneg %p368
    $region34: #{basic_conv.2} parent=5 // pred_check_branch
      %371 = sbr.rel (%p369) target = $region36
    $region35: #{basic_conv.2} parent=5 // pred_region
      %s372 = ssub.s32 %s8, 2
      // Predicated region
      $region37: #{basic_conv.2} parent=35 // pred_check
        %p373 = pneg %p84
      $region38: #{basic_conv.2} parent=35 // pred_check_branch
        %375 = sbr.rel (%p373) target = $region40
      $region39: #{basic_conv.2} parent=35 // pred_region
        %p376 = scmp.lt.s32.totalorder %s14, 1
        %s377 = scalar_select %p376, %s14, 1
        %s378 = smul.addr %s377, 2
        %s379 = scalar_lea.vmem %s2, %s378
      $region40: #{basic_conv.2} parent=35 // pred_fallthru
        _
    $region36: #{basic_conv.2} parent=5 // pred_fallthru
      _
  $region6: #{basic_conv.2} parent=0 // loop_footer
    %s12 = sadd.s32 1, %s8
  $region7: #{basic_conv.2} parent=0 // loop_footer_branch
    %7 = sbr.rel target = $region3
  $region8: #{basic_conv.2} parent=0 // loop_exit
    _

</llo_original>
